<compile_context>
chip_gen: v5e
topology: v5e:2x2
jax: 0.10.0
libtpu: 0.0.40
codegen_flags: <defaults>
</compile_context>

<pallas_src>
import functools

import jax
import jax.numpy as jnp
from jax import lax
from jax.experimental import pallas as pl
from jax.experimental.pallas import tpu as pltpu


# ----------------------------------------------------------------------------
# Fused kernel: for one batch element, run every conv layer (dilated, padded,
# no chomp) + ReLU, then mean-pool over length and apply the FC head.
# ----------------------------------------------------------------------------
def make_fused_kernel(dilations, kernel_size):
    nl = len(dilations)

    def kernel(x_ref, *args):
        # args = (w_0, b_0, ..., w_{nl-1}, b_{nl-1}, wfc, bfc, o_ref)
        o_ref = args[-1]
        wfc_ref = args[2 * nl]           # (C_last, NC)  bf16
        bfc_ref = args[2 * nl + 1]       # (1, NC)       f32

        # (L0, Cin) activation, length on sublanes, channels on lanes.
        h = x_ref[0].astype(jnp.float32)

        for i in range(nl):
            w_ref = args[2 * i]          # (K, Cin_i, Cout_i)  bf16
            b_ref = args[2 * i + 1]      # (1, Cout_i)         f32
            d = dilations[i]
            pad = (kernel_size - 1) * d
            l_in, c_in = h.shape
            l_out = l_in + pad           # Conv1d(padding=pad, dilation=d), no Chomp1d
            c_out = w_ref.shape[2]

            # Zero-pad inside the kernel (VMEM-local, never touches HBM).
            if pad > 0:
                zrows = jnp.zeros((pad, c_in), jnp.float32)
                hp = jnp.concatenate([zrows, h, zrows], axis=0)   # (l_in + 2*pad, c_in)
            else:
                hp = h

            # K tap matmuls: (l_out, Cin) @ (Cin, Cout), bf16 operands, f32 accum.
            acc = jnp.zeros((l_out, c_out), jnp.float32)
            for k in range(kernel_size):
                tap = hp[k * d: k * d + l_out, :].astype(jnp.bfloat16)
                acc = acc + jnp.dot(tap, w_ref[k],
                                    preferred_element_type=jnp.float32)

            # Bias + ReLU in f32.
            h = jnp.maximum(acc + b_ref[...], 0.0)
            # TODO(synk): nn.Dropout(p=0.2) is identity in eval mode; training-mode
            # stochastic dropout (pltpu.prng_*) is not implemented here.

        # AdaptiveAvgPool1d(1) == mean over length (sublane axis), in f32.
        pooled = jnp.mean(h, axis=0, keepdims=True)               # (1, C_last)

        # FC head: bf16 operands, f32 accumulation, f32 bias add.
        logits = jnp.dot(pooled.astype(jnp.bfloat16), wfc_ref[...],
                         preferred_element_type=jnp.float32) + bfc_ref[...]
        o_ref[0] = logits.astype(o_ref.dtype)                     # (1, NC)

    return kernel


# ----------------------------------------------------------------------------
# Wrapper: pre-pack operands, one pallas_call for the whole forward pass.
# ----------------------------------------------------------------------------
def temporal_conv_net_forward(x, params, kernel_size):
    B, c_in, L = x.shape
    convs = params["convs"]
    nl = len(convs)
    dilations = tuple(2 ** i for i in range(nl))

    # Input in (B, L, C) layout, bf16 (matmul operand dtype) — single tiny op.
    x_t = jnp.transpose(x, (0, 2, 1)).astype(jnp.bfloat16)

    # Pre-pack weights: (Cout, Cin, K) -> (K, Cin, Cout) bf16; bias -> (1, Cout) f32.
    packed = []
    for w, b in convs:
        packed.append(jnp.transpose(w, (2, 1, 0)).astype(jnp.bfloat16))
        packed.append(b.reshape(1, -1).astype(jnp.float32))

    wfc_t = params["fc_w"].T.astype(jnp.bfloat16)        # (C_last, NC)
    bfc = params["fc_b"].reshape(1, -1).astype(jnp.float32)
    c_last, nc = wfc_t.shape

    kernel = make_fused_kernel(dilations, kernel_size)

    in_specs = [pl.BlockSpec((1, L, c_in), lambda b: (b, 0, 0))]
    for w_p, b_p in zip(packed[0::2], packed[1::2]):
        kk, ci, co = w_p.shape
        in_specs.append(pl.BlockSpec((kk, ci, co), lambda b: (0, 0, 0)))
        in_specs.append(pl.BlockSpec((1, co), lambda b: (0, 0)))
    in_specs.append(pl.BlockSpec((c_last, nc), lambda b: (0, 0)))
    in_specs.append(pl.BlockSpec((1, nc), lambda b: (0, 0)))

    out = pl.pallas_call(
        kernel,
        out_shape=jax.ShapeDtypeStruct((B, 1, nc), jnp.float32),
        grid_spec=pltpu.PrefetchScalarGridSpec(
            num_scalar_prefetch=0,
            grid=(B,),
            in_specs=in_specs,
            out_specs=pl.BlockSpec((1, 1, nc), lambda b: (b, 0, 0)),
        ),
        compiler_params=pltpu.CompilerParams(
            dimension_semantics=("parallel",),       # batch axis -> megacore / 2 TCs on v7x
            vmem_limit_bytes=48 * 1024 * 1024,       # safe on v5e/v6e (128 MiB) and v7x (64 MiB)
        ),
    )(x_t, *packed, wfc_t, bfc)
    return out.reshape(B, nc)


# ----------------------------------------------------------------------------
# Params + pure-JAX reference (same semantics as the PyTorch module, eval mode)
# ----------------------------------------------------------------------------
def init_params(key, num_inputs, num_channels, kernel_size, num_classes):
    convs = []
    in_ch = num_inputs
    for out_ch in num_channels:
        key, kw, kb = jax.random.split(key, 3)
        w = jax.random.normal(kw, (out_ch, in_ch, kernel_size), jnp.float32) * 0.2
        b = jax.random.normal(kb, (out_ch,), jnp.float32) * 0.1
        convs.append((w, b))
        in_ch = out_ch
    key, kw, kb = jax.random.split(key, 3)
    fc_w = jax.random.normal(kw, (num_classes, num_channels[-1]), jnp.float32) * 0.2
    fc_b = jax.random.normal(kb, (num_classes,), jnp.float32) * 0.1
    return {"convs": convs, "fc_w": fc_w, "fc_b": fc_b}


def reference_forward(x, params, kernel_size, compute_dtype=jnp.float32):
    """PyTorch-equivalent forward. compute_dtype controls matmul operand dtype
    (f32 = exact module semantics; bf16 mirrors the kernel's precision)."""
    h = x
    for i, (w, b) in enumerate(params["convs"]):
        d = 2 ** i
        pad = (kernel_size - 1) * d
        h = lax.conv_general_dilated(
            h.astype(compute_dtype), w.astype(compute_dtype),
            window_strides=(1,), padding=[(pad, pad)],
            rhs_dilation=(d,), dimension_numbers=("NCH", "OIH", "NCH"),
            preferred_element_type=jnp.float32)
        h = jnp.maximum(h + b[None, :, None], 0.0)
    pooled = jnp.mean(h, axis=-1)
    logits = jnp.dot(pooled.astype(compute_dtype),
                     params["fc_w"].T.astype(compute_dtype),
                     preferred_element_type=jnp.float32) + params["fc_b"]
    return logits


if __name__ == "__main__":
    key = jax.random.PRNGKey(0)
    B, num_inputs, L = 2, 4, 16
    num_channels = (8, 16)
    kernel_size = 2
    num_classes = 2

    kx, kp = jax.random.split(key)
    x = jax.random.normal(kx, (B, num_inputs, L), jnp.float32)
    params = init_params(kp, num_inputs, num_channels, kernel_size, num_classes)

    fwd = jax.jit(functools.partial(temporal_conv_net_forward, kernel_size=kernel_size))
    out = jax.block_until_ready(fwd(x, params))

    assert out.shape == (B, num_classes), out.shape

    # Tight check vs. a precision-matched reference (bf16 matmul operands, f32 accum).
    ref_bf16 = reference_forward(x, params, kernel_size, compute_dtype=jnp.bfloat16)
    assert jnp.allclose(out, ref_bf16, atol=1e-4, rtol=1e-4), (out, ref_bf16)

    # Loose check vs. the full-f32 module semantics (bf16 operand rounding only).
    ref_f32 = reference_forward(x, params, kernel_size, compute_dtype=jnp.float32)
    assert jnp.allclose(out, ref_f32, atol=5e-2, rtol=5e-2), (out, ref_f32)

    print("KERNEL_OK")
</pallas_src>

<mosaic_0001>
module attributes {stable_mosaic.version = 11 : i64} {
  func.func @kernel(%arg0: i32, %arg1: memref<1x16x4xbf16, #tpu.memory_space<vmem>>, %arg2: memref<2x4x8xbf16, #tpu.memory_space<vmem>>, %arg3: memref<1x8xf32, #tpu.memory_space<vmem>>, %arg4: memref<2x8x16xbf16, #tpu.memory_space<vmem>>, %arg5: memref<1x16xf32, #tpu.memory_space<vmem>>, %arg6: memref<16x2xbf16, #tpu.memory_space<vmem>>, %arg7: memref<1x2xf32, #tpu.memory_space<vmem>>, %arg8: memref<1x1x2xf32, #tpu.memory_space<vmem>>) attributes {dimension_semantics = [#tpu.dimension_semantics<parallel>], iteration_bounds = array<i64: 2>, scalar_prefetch = 0 : i64, scratch_operands = 0 : i64, tpu.core_type = #tpu.core_type<tc>, window_params = [{transform_indices = @transform_0, window_bounds = array<i64: 1, 16, 4>}, {pipeline_mode = #tpu.pipeline_mode<synchronous>, transform_indices = @transform_1, window_bounds = array<i64: 2, 4, 8>}, {pipeline_mode = #tpu.pipeline_mode<synchronous>, transform_indices = @transform_2, window_bounds = array<i64: 1, 8>}, {pipeline_mode = #tpu.pipeline_mode<synchronous>, transform_indices = @transform_3, window_bounds = array<i64: 2, 8, 16>}, {pipeline_mode = #tpu.pipeline_mode<synchronous>, transform_indices = @transform_4, window_bounds = array<i64: 1, 16>}, {pipeline_mode = #tpu.pipeline_mode<synchronous>, transform_indices = @transform_5, window_bounds = array<i64: 16, 2>}, {pipeline_mode = #tpu.pipeline_mode<synchronous>, transform_indices = @transform_6, window_bounds = array<i64: 1, 2>}, {transform_indices = @transform_7, window_bounds = array<i64: 1, 1, 2>}]} {
    %c0 = arith.constant 0 : index
    %c0_0 = arith.constant 0 : index
    %c0_1 = arith.constant 0 : index
    %0 = vector.load %arg1[%c0, %c0_0, %c0_1] : memref<1x16x4xbf16, #tpu.memory_space<vmem>>, vector<1x16x4xbf16>
    %1 = vector.shape_cast %0 : vector<1x16x4xbf16> to vector<16x4xbf16>
    %2 = arith.extf %1 : vector<16x4xbf16> to vector<16x4xf32>
    %cst = arith.constant 0.000000e+00 : f32
    %3 = vector.broadcast %cst : f32 to vector<1x4xf32>
    %4 = tpu.concatenate %3, %2, %3 in 0 : vector<1x4xf32>, vector<16x4xf32>, vector<1x4xf32> -> vector<18x4xf32>
    %cst_2 = arith.constant 0.000000e+00 : f32
    %5 = vector.broadcast %cst_2 : f32 to vector<17x8xf32>
    %6 = vector.extract_strided_slice %4 {offsets = [0, 0], sizes = [17, 4], strides = [1, 1]} : vector<18x4xf32> to vector<17x4xf32>
    %7 = arith.truncf %6 : vector<17x4xf32> to vector<17x4xbf16>
    %c0_3 = arith.constant 0 : index
    %c0_4 = arith.constant 0 : index
    %c0_5 = arith.constant 0 : index
    %8 = vector.load %arg2[%c0_3, %c0_4, %c0_5] : memref<2x4x8xbf16, #tpu.memory_space<vmem>>, vector<1x4x8xbf16>
    %9 = vector.shape_cast %8 : vector<1x4x8xbf16> to vector<4x8xbf16>
    %cst_6 = arith.constant dense<0.000000e+00> : vector<17x8xf32>
    %10 = tpu.matmul %7, %9, %cst_6 {dimension_numbers = #tpu.dot_dimension_numbers<[1], [0], [0], [1], [0, 0, 1, 1], [], []>} : vector<17x4xbf16>, vector<4x8xbf16>, vector<17x8xf32> -> vector<17x8xf32>
    %11 = arith.addf %5, %10 : vector<17x8xf32>
    %12 = vector.extract_strided_slice %4 {offsets = [1, 0], sizes = [17, 4], strides = [1, 1]} : vector<18x4xf32> to vector<17x4xf32>
    %13 = arith.truncf %12 : vector<17x4xf32> to vector<17x4xbf16>
    %c1 = arith.constant 1 : index
    %c0_7 = arith.constant 0 : index
    %c0_8 = arith.constant 0 : index
    %14 = vector.load %arg2[%c1, %c0_7, %c0_8] : memref<2x4x8xbf16, #tpu.memory_space<vmem>>, vector<1x4x8xbf16>
    %15 = vector.shape_cast %14 : vector<1x4x8xbf16> to vector<4x8xbf16>
    %cst_9 = arith.constant dense<0.000000e+00> : vector<17x8xf32>
    %16 = tpu.matmul %13, %15, %cst_9 {dimension_numbers = #tpu.dot_dimension_numbers<[1], [0], [0], [1], [0, 0, 1, 1], [], []>} : vector<17x4xbf16>, vector<4x8xbf16>, vector<17x8xf32> -> vector<17x8xf32>
    %17 = arith.addf %11, %16 : vector<17x8xf32>
    %c0_10 = arith.constant 0 : index
    %c0_11 = arith.constant 0 : index
    %18 = vector.load %arg3[%c0_10, %c0_11] : memref<1x8xf32, #tpu.memory_space<vmem>>, vector<1x8xf32>
    %19 = vector.broadcast %18 : vector<1x8xf32> to vector<17x8xf32>
    %20 = arith.addf %17, %19 : vector<17x8xf32>
    %cst_12 = arith.constant 0.000000e+00 : f32
    %21 = vector.broadcast %cst_12 : f32 to vector<17x8xf32>
    %22 = arith.maximumf %20, %21 : vector<17x8xf32>
    %cst_13 = arith.constant 0.000000e+00 : f32
    %23 = vector.broadcast %cst_13 : f32 to vector<2x8xf32>
    %24 = tpu.concatenate %23, %22, %23 in 0 : vector<2x8xf32>, vector<17x8xf32>, vector<2x8xf32> -> vector<21x8xf32>
    %cst_14 = arith.constant 0.000000e+00 : f32
    %25 = vector.broadcast %cst_14 : f32 to vector<19x16xf32>
    %26 = vector.extract_strided_slice %24 {offsets = [0, 0], sizes = [19, 8], strides = [1, 1]} : vector<21x8xf32> to vector<19x8xf32>
    %27 = arith.truncf %26 : vector<19x8xf32> to vector<19x8xbf16>
    %c0_15 = arith.constant 0 : index
    %c0_16 = arith.constant 0 : index
    %c0_17 = arith.constant 0 : index
    %28 = vector.load %arg4[%c0_15, %c0_16, %c0_17] : memref<2x8x16xbf16, #tpu.memory_space<vmem>>, vector<1x8x16xbf16>
    %29 = vector.shape_cast %28 : vector<1x8x16xbf16> to vector<8x16xbf16>
    %cst_18 = arith.constant dense<0.000000e+00> : vector<19x16xf32>
    %30 = tpu.matmul %27, %29, %cst_18 {dimension_numbers = #tpu.dot_dimension_numbers<[1], [0], [0], [1], [0, 0, 1, 1], [], []>} : vector<19x8xbf16>, vector<8x16xbf16>, vector<19x16xf32> -> vector<19x16xf32>
    %31 = arith.addf %25, %30 : vector<19x16xf32>
    %32 = vector.extract_strided_slice %24 {offsets = [2, 0], sizes = [19, 8], strides = [1, 1]} : vector<21x8xf32> to vector<19x8xf32>
    %33 = arith.truncf %32 : vector<19x8xf32> to vector<19x8xbf16>
    %c1_19 = arith.constant 1 : index
    %c0_20 = arith.constant 0 : index
    %c0_21 = arith.constant 0 : index
    %34 = vector.load %arg4[%c1_19, %c0_20, %c0_21] : memref<2x8x16xbf16, #tpu.memory_space<vmem>>, vector<1x8x16xbf16>
    %35 = vector.shape_cast %34 : vector<1x8x16xbf16> to vector<8x16xbf16>
    %cst_22 = arith.constant dense<0.000000e+00> : vector<19x16xf32>
    %36 = tpu.matmul %33, %35, %cst_22 {dimension_numbers = #tpu.dot_dimension_numbers<[1], [0], [0], [1], [0, 0, 1, 1], [], []>} : vector<19x8xbf16>, vector<8x16xbf16>, vector<19x16xf32> -> vector<19x16xf32>
    %37 = arith.addf %31, %36 : vector<19x16xf32>
    %c0_23 = arith.constant 0 : index
    %c0_24 = arith.constant 0 : index
    %38 = vector.load %arg5[%c0_23, %c0_24] : memref<1x16xf32, #tpu.memory_space<vmem>>, vector<1x16xf32>
    %39 = vector.broadcast %38 : vector<1x16xf32> to vector<19x16xf32>
    %40 = arith.addf %37, %39 : vector<19x16xf32>
    %cst_25 = arith.constant 0.000000e+00 : f32
    %41 = vector.broadcast %cst_25 : f32 to vector<19x16xf32>
    %42 = arith.maximumf %40, %41 : vector<19x16xf32>
    %cst_26 = arith.constant dense<0.000000e+00> : vector<16xf32>
    %43 = vector.multi_reduction <add>, %42, %cst_26 [0] : vector<19x16xf32> to vector<16xf32>
    %44 = vector.shape_cast %43 : vector<16xf32> to vector<1x16xf32>
    %cst_27 = arith.constant 1.900000e+01 : f32
    %45 = vector.broadcast %cst_27 : f32 to vector<1x16xf32>
    %46 = arith.divf %44, %45 : vector<1x16xf32>
    %47 = arith.truncf %46 : vector<1x16xf32> to vector<1x16xbf16>
    %c0_28 = arith.constant 0 : index
    %c0_29 = arith.constant 0 : index
    %48 = vector.load %arg6[%c0_28, %c0_29] : memref<16x2xbf16, #tpu.memory_space<vmem>>, vector<16x2xbf16>
    %cst_30 = arith.constant dense<0.000000e+00> : vector<1x2xf32>
    %49 = tpu.matmul %47, %48, %cst_30 {dimension_numbers = #tpu.dot_dimension_numbers<[1], [0], [0], [1], [0, 0, 1, 1], [], []>} : vector<1x16xbf16>, vector<16x2xbf16>, vector<1x2xf32> -> vector<1x2xf32>
    %c0_31 = arith.constant 0 : index
    %c0_32 = arith.constant 0 : index
    %50 = vector.load %arg7[%c0_31, %c0_32] : memref<1x2xf32, #tpu.memory_space<vmem>>, vector<1x2xf32>
    %51 = arith.addf %49, %50 : vector<1x2xf32>
    %c0_33 = arith.constant 0 : index
    %c0_34 = arith.constant 0 : index
    %c0_35 = arith.constant 0 : index
    %52 = vector.load %arg8[%c0_33, %c0_34, %c0_35] : memref<1x1x2xf32, #tpu.memory_space<vmem>>, vector<1x1x2xf32>
    %53 = vector.shape_cast %52 : vector<1x1x2xf32> to vector<1x2xf32>
    %54 = vector.shape_cast %51 : vector<1x2xf32> to vector<1x1x2xf32>
    tpu.vector_store %arg8[%c0_33, %c0_34, %c0_35], %54 {strides = array<i32>} : memref<1x1x2xf32, #tpu.memory_space<vmem>>, vector<1x1x2xf32>,
    return
  }
  func.func @transform_0(%arg0: i32) -> (i32, i32, i32) {
    %c0_i32 = arith.constant 0 : i32
    %c0_i32_0 = arith.constant 0 : i32
    %c0_i32_1 = arith.constant 0 : i32
    return %arg0, %c0_i32, %c0_i32_0 : i32, i32, i32
  }
  func.func @transform_1(%arg0: i32) -> (i32, i32, i32) {
    %c0_i32 = arith.constant 0 : i32
    %c0_i32_0 = arith.constant 0 : i32
    %c0_i32_1 = arith.constant 0 : i32
    %c0_i32_2 = arith.constant 0 : i32
    return %c0_i32, %c0_i32_0, %c0_i32_1 : i32, i32, i32
  }
  func.func @transform_2(%arg0: i32) -> (i32, i32) {
    %c0_i32 = arith.constant 0 : i32
    %c0_i32_0 = arith.constant 0 : i32
    %c0_i32_1 = arith.constant 0 : i32
    return %c0_i32, %c0_i32_0 : i32, i32
  }
  func.func @transform_3(%arg0: i32) -> (i32, i32, i32) {
    %c0_i32 = arith.constant 0 : i32
    %c0_i32_0 = arith.constant 0 : i32
    %c0_i32_1 = arith.constant 0 : i32
    %c0_i32_2 = arith.constant 0 : i32
    return %c0_i32, %c0_i32_0, %c0_i32_1 : i32, i32, i32
  }
  func.func @transform_4(%arg0: i32) -> (i32, i32) {
    %c0_i32 = arith.constant 0 : i32
    %c0_i32_0 = arith.constant 0 : i32
    %c0_i32_1 = arith.constant 0 : i32
    return %c0_i32, %c0_i32_0 : i32, i32
  }
  func.func @transform_5(%arg0: i32) -> (i32, i32) {
    %c0_i32 = arith.constant 0 : i32
    %c0_i32_0 = arith.constant 0 : i32
    %c0_i32_1 = arith.constant 0 : i32
    return %c0_i32, %c0_i32_0 : i32, i32
  }
  func.func @transform_6(%arg0: i32) -> (i32, i32) {
    %c0_i32 = arith.constant 0 : i32
    %c0_i32_0 = arith.constant 0 : i32
    %c0_i32_1 = arith.constant 0 : i32
    return %c0_i32, %c0_i32_0 : i32, i32
  }
  func.func @transform_7(%arg0: i32) -> (i32, i32, i32) {
    %c0_i32 = arith.constant 0 : i32
    %c0_i32_0 = arith.constant 0 : i32
    %c0_i32_1 = arith.constant 0 : i32
    return %arg0, %c0_i32, %c0_i32_0 : i32, i32, i32
  }
}

</mosaic_0001>

<llo_original>
// kernel: temporal_conv_net_forward.1
$region0: #{temporal_conv_net_forward.1}
  #allocation0 [shape = 'u32[]', space=smem, size = 0x4, offset = 0x4, fixed_abs, tag = 'smem constant byte address 0x4 - core index']
  #allocation1 [shape = 'u32[72,128]{1,0:T(1,128)}', space=vmem, size = 0x9000, scoped, tag = 'internal scratch']
  %s0 = inlined_call_operand.vmem [shape: bf16[2,16,4], index: 0, kind: input, shape index: {}]
  %s1 = inlined_call_operand.vmem [shape: bf16[2,4,8], index: 1, kind: input, shape index: {}]
  %s2 = inlined_call_operand.vmem [shape: f32[1,8], index: 2, kind: input, shape index: {}]
  %s3 = inlined_call_operand.vmem [shape: bf16[2,8,16], index: 3, kind: input, shape index: {}]
  %s4 = inlined_call_operand.vmem [shape: f32[1,16], index: 4, kind: input, shape index: {}]
  %s5 = inlined_call_operand.vmem [shape: bf16[16,2], index: 5, kind: input, shape index: {}]
  %s6 = inlined_call_operand.vmem [shape: f32[1,2], index: 6, kind: input, shape index: {}]
  %s7 = inlined_call_operand.hbm [shape: f32[2,1,2], index: 7, kind: output, shape index: {}]
  %s8 = sld [smem:[#allocation0]]
  $region61: #{temporal_conv_net_forward.1} parent=0
    _
  %s10 = ssub.s32 1, %s8
  %s11 = scalar_select 0, %s10, %s8
  $region1: #{temporal_conv_net_forward.1} parent=0
    #allocation2 [shape = 'u8[1024]{0}', space=vmem, size = 0x400, scoped, tag = 'output window, operand 0']
    #allocation3 [shape = 's32[2]{0}', space=sflag, size = 0x8, scoped, tag = 'scoped memory for temporal_conv_net_forward.1']
    %12 = vsyncpa [#allocation3], 0
    %s13 = scalar_lea.sflag [#allocation3], 1
    %14 = vsyncpa %s13, 0
    loop: start=0, step=1, limit=4
    $region2: #{temporal_conv_net_forward.1} parent=1 // loop_pre_header
      _
    $region3: #{temporal_conv_net_forward.1} parent=1 // loop_header
      %s16 = sphi 0, %s20
      %p17 = scmp.ge.s32.totalorder %s16, 4
      %s26 = sphi 0, %s28
      %s29 = sphi 0, %s26
      %s30 = sphi 0, %s29
      %s46 = sphi 0, %s30
      %s50 = sphi 0, %s50
      %s52 = sphi 0, %s50
      %s53 = sphi 0, %s52
      %s67 = sphi 0, %s53
      %s71 = sphi 0, %s71
      %s73 = sphi 0, %s71
      %s74 = sphi 0, %s73
      %s88 = sphi 0, %s74
      %s92 = sphi 0, %s92
      %s94 = sphi 0, %s92
      %s95 = sphi 0, %s94
      %s109 = sphi 0, %s95
      %s113 = sphi 0, %s113
      %s115 = sphi 0, %s113
      %s116 = sphi 0, %s115
      %s130 = sphi 0, %s116
      %s134 = sphi 0, %s134
      %s136 = sphi 0, %s134
      %s137 = sphi 0, %s136
      %s151 = sphi 0, %s137
      %s155 = sphi 0, %s155
      %s157 = sphi 0, %s155
      %s158 = sphi 0, %s157
      %s172 = sphi 0, %s158
      %s178 = sphi 0, %s180
      %s181 = sphi 0, %s178
      %s182 = sphi 0, %s181
      %s198 = sphi 0, %s182
    $region4: #{temporal_conv_net_forward.1} parent=1 // loop_header_branch
      %19 = sbr.rel (%p17) target = $region8
    $region5: #{temporal_conv_net_forward.1} parent=1 // loop_body
      %s21 = ssub.s32 %s16, 1
      %s22 = ssub.s32 %s16, 2
      %s23 = sadd.s32 %s16, 1
      %s24 = ssub.s32 %s16, %s23
      %p25 = scmp.eq.s32.totalorder %s24, 0
      %s27 = sadd.s32 %s26, 1
      %s28 = scalar_select %p25, %s26, %s27
      %p31 = pneg %p25
      %p32 = scmp.eq.s32.totalorder %s16, 1
      %p33 = por %p31, %p32
      %p34 = scmp.ne.s32.totalorder %s26, %s29
      %p35 = scmp.eq.s32.totalorder %s16, 0
      %p36 = por %p34, %p35
      %p37 = scmp.ne.s32.totalorder %s26, %s29
      %p38 = scmp.eq.s32.totalorder %s21, 1
      %p39 = por %p37, %p38
      %p40 = scmp.ne.s32.totalorder %s29, %s30
      %p41 = scmp.eq.s32.totalorder %s21, 0
      %p42 = por %p40, %p41
      %p43 = scmp.ne.s32.totalorder %s29, %s30
      %p44 = scmp.eq.s32.totalorder %s22, 1
      %p45 = por %p43, %p44
      %p47 = scmp.ne.s32.totalorder %s30, %s46
      %p48 = scmp.eq.s32.totalorder %s22, 0
      %p49 = por %p47, %p48
      %s51 = sadd.s32 %s50, 1
      %p54 = scmp.eq.s32.totalorder %s16, 1
      %p55 = scmp.ne.s32.totalorder %s50, %s52
      %p56 = scmp.eq.s32.totalorder %s16, 0
      %p57 = por %p55, %p56
      %p58 = scmp.ne.s32.totalorder %s50, %s52
      %p59 = scmp.eq.s32.totalorder %s21, 1
      %p60 = por %p58, %p59
      %p61 = scmp.ne.s32.totalorder %s52, %s53
      %p62 = scmp.eq.s32.totalorder %s21, 0
      %p63 = por %p61, %p62
      %p64 = scmp.ne.s32.totalorder %s52, %s53
      %p65 = scmp.eq.s32.totalorder %s22, 1
      %p66 = por %p64, %p65
      %p68 = scmp.ne.s32.totalorder %s53, %s67
      %p69 = scmp.eq.s32.totalorder %s22, 0
      %p70 = por %p68, %p69
      %s72 = sadd.s32 %s71, 1
      %p75 = scmp.eq.s32.totalorder %s16, 1
      %p76 = scmp.ne.s32.totalorder %s71, %s73
      %p77 = scmp.eq.s32.totalorder %s16, 0
      %p78 = por %p76, %p77
      %p79 = scmp.ne.s32.totalorder %s71, %s73
      %p80 = scmp.eq.s32.totalorder %s21, 1
      %p81 = por %p79, %p80
      %p82 = scmp.ne.s32.totalorder %s73, %s74
      %p83 = scmp.eq.s32.totalorder %s21, 0
      %p84 = por %p82, %p83
      %p85 = scmp.ne.s32.totalorder %s73, %s74
      %p86 = scmp.eq.s32.totalorder %s22, 1
      %p87 = por %p85, %p86
      %p89 = scmp.ne.s32.totalorder %s74, %s88
      %p90 = scmp.eq.s32.totalorder %s22, 0
      %p91 = por %p89, %p90
      %s93 = sadd.s32 %s92, 1
      %p96 = scmp.eq.s32.totalorder %s16, 1
      %p97 = scmp.ne.s32.totalorder %s92, %s94
      %p98 = scmp.eq.s32.totalorder %s16, 0
      %p99 = por %p97, %p98
      %p100 = scmp.ne.s32.totalorder %s92, %s94
      %p101 = scmp.eq.s32.totalorder %s21, 1
      %p102 = por %p100, %p101
      %p103 = scmp.ne.s32.totalorder %s94, %s95
      %p104 = scmp.eq.s32.totalorder %s21, 0
      %p105 = por %p103, %p104
      %p106 = scmp.ne.s32.totalorder %s94, %s95
      %p107 = scmp.eq.s32.totalorder %s22, 1
      %p108 = por %p106, %p107
      %p110 = scmp.ne.s32.totalorder %s95, %s109
      %p111 = scmp.eq.s32.totalorder %s22, 0
      %p112 = por %p110, %p111
      %s114 = sadd.s32 %s113, 1
      %p117 = scmp.eq.s32.totalorder %s16, 1
      %p118 = scmp.ne.s32.totalorder %s113, %s115
      %p119 = scmp.eq.s32.totalorder %s16, 0
      %p120 = por %p118, %p119
      %p121 = scmp.ne.s32.totalorder %s113, %s115
      %p122 = scmp.eq.s32.totalorder %s21, 1
      %p123 = por %p121, %p122
      %p124 = scmp.ne.s32.totalorder %s115, %s116
      %p125 = scmp.eq.s32.totalorder %s21, 0
      %p126 = por %p124, %p125
      %p127 = scmp.ne.s32.totalorder %s115, %s116
      %p128 = scmp.eq.s32.totalorder %s22, 1
      %p129 = por %p127, %p128
      %p131 = scmp.ne.s32.totalorder %s116, %s130
      %p132 = scmp.eq.s32.totalorder %s22, 0
      %p133 = por %p131, %p132
      %s135 = sadd.s32 %s134, 1
      %p138 = scmp.eq.s32.totalorder %s16, 1
      %p139 = scmp.ne.s32.totalorder %s134, %s136
      %p140 = scmp.eq.s32.totalorder %s16, 0
      %p141 = por %p139, %p140
      %p142 = scmp.ne.s32.totalorder %s134, %s136
      %p143 = scmp.eq.s32.totalorder %s21, 1
      %p144 = por %p142, %p143
      %p145 = scmp.ne.s32.totalorder %s136, %s137
      %p146 = scmp.eq.s32.totalorder %s21, 0
      %p147 = por %p145, %p146
      %p148 = scmp.ne.s32.totalorder %s136, %s137
      %p149 = scmp.eq.s32.totalorder %s22, 1
      %p150 = por %p148, %p149
      %p152 = scmp.ne.s32.totalorder %s137, %s151
      %p153 = scmp.eq.s32.totalorder %s22, 0
      %p154 = por %p152, %p153
      %s156 = sadd.s32 %s155, 1
      %p159 = scmp.eq.s32.totalorder %s16, 1
      %p160 = scmp.ne.s32.totalorder %s155, %s157
      %p161 = scmp.eq.s32.totalorder %s16, 0
      %p162 = por %p160, %p161
      %p163 = scmp.ne.s32.totalorder %s155, %s157
      %p164 = scmp.eq.s32.totalorder %s21, 1
      %p165 = por %p163, %p164
      %p166 = scmp.ne.s32.totalorder %s157, %s158
      %p167 = scmp.eq.s32.totalorder %s21, 0
      %p168 = por %p166, %p167
      %p169 = scmp.ne.s32.totalorder %s157, %s158
      %p170 = scmp.eq.s32.totalorder %s22, 1
      %p171 = por %p169, %p170
      %p173 = scmp.ne.s32.totalorder %s158, %s172
      %p174 = scmp.eq.s32.totalorder %s22, 0
      %p175 = por %p173, %p174
      %s176 = ssub.s32 %s16, %s23
      %p177 = scmp.eq.s32.totalorder %s176, 0
      %s179 = sadd.s32 %s178, 1
      %s180 = scalar_select %p177, %s178, %s179
      %p183 = pneg %p177
      %p184 = scmp.eq.s32.totalorder %s16, 1
      %p185 = por %p183, %p184
      %p186 = scmp.ne.s32.totalorder %s178, %s181
      %p187 = scmp.eq.s32.totalorder %s16, 0
      %p188 = por %p186, %p187
      %p189 = scmp.ne.s32.totalorder %s178, %s181
      %p190 = scmp.eq.s32.totalorder %s21, 1
      %p191 = por %p189, %p190
      %p192 = scmp.ne.s32.totalorder %s181, %s182
      %p193 = scmp.eq.s32.totalorder %s21, 0
      %p194 = por %p192, %p193
      %p195 = scmp.ne.s32.totalorder %s181, %s182
      %p196 = scmp.eq.s32.totalorder %s22, 1
      %p197 = por %p195, %p196
      %p199 = scmp.ne.s32.totalorder %s182, %s198
      %p200 = scmp.eq.s32.totalorder %s22, 0
      %p201 = por %p199, %p200
      %p202 = scmp.le.s32.totalorder 1, %s16
      %p203 = scmp.lt.s32.totalorder %s16, 3
      %p204 = pnand %p202, %p203
      %p205 = pneg %p204
      // Predicated region
      $region9: #{temporal_conv_net_forward.1} parent=5 // pred_check
        _
      $region10: #{temporal_conv_net_forward.1} parent=5 // pred_check_branch
        %207 = sbr.rel (%p204) target = $region12
      $region11: #{temporal_conv_net_forward.1} parent=5 // pred_region
        %s208 = ssub.s32 %s16, 1
        // Predicated region
        $region13: #{temporal_conv_net_forward.1} parent=11 // pred_check
          %p209 = pneg %p63
        $region14: #{temporal_conv_net_forward.1} parent=11 // pred_check_branch
          %211 = sbr.rel (%p209) target = $region16
        $region15: #{temporal_conv_net_forward.1} parent=11 // pred_region
          _
        $region16: #{temporal_conv_net_forward.1} parent=11 // pred_fallthru
          _
        // Predicated region
        $region17: #{temporal_conv_net_forward.1} parent=11 // pred_check
          %p212 = pneg %p84
        $region18: #{temporal_conv_net_forward.1} parent=11 // pred_check_branch
          %214 = sbr.rel (%p212) target = $region20
        $region19: #{temporal_conv_net_forward.1} parent=11 // pred_region
          _
        $region20: #{temporal_conv_net_forward.1} parent=11 // pred_fallthru
          _
        // Predicated region
        $region21: #{temporal_conv_net_forward.1} parent=11 // pred_check
          %p215 = pneg %p105
        $region22: #{temporal_conv_net_forward.1} parent=11 // pred_check_branch
          %217 = sbr.rel (%p215) target = $region24
        $region23: #{temporal_conv_net_forward.1} parent=11 // pred_region
          _
        $region24: #{temporal_conv_net_forward.1} parent=11 // pred_fallthru
          _
        // Predicated region
        $region25: #{temporal_conv_net_forward.1} parent=11 // pred_check
          %p218 = pneg %p126
        $region26: #{temporal_conv_net_forward.1} parent=11 // pred_check_branch
          %220 = sbr.rel (%p218) target = $region28
        $region27: #{temporal_conv_net_forward.1} parent=11 // pred_region
          _
        $region28: #{temporal_conv_net_forward.1} parent=11 // pred_fallthru
          _
        // Predicated region
        $region29: #{temporal_conv_net_forward.1} parent=11 // pred_check
          %p221 = pneg %p147
        $region30: #{temporal_conv_net_forward.1} parent=11 // pred_check_branch
          %223 = sbr.rel (%p221) target = $region32
        $region31: #{temporal_conv_net_forward.1} parent=11 // pred_region
          _
        $region32: #{temporal_conv_net_forward.1} parent=11 // pred_fallthru
          _
        // Predicated region
        $region33: #{temporal_conv_net_forward.1} parent=11 // pred_check
          %p224 = pneg %p168
        $region34: #{temporal_conv_net_forward.1} parent=11 // pred_check_branch
          %226 = sbr.rel (%p224) target = $region36
        $region35: #{temporal_conv_net_forward.1} parent=11 // pred_region
          _
        $region36: #{temporal_conv_net_forward.1} parent=11 // pred_fallthru
          _
      $region12: #{temporal_conv_net_forward.1} parent=5 // pred_fallthru
        _
      %p227 = scmp.lt.s32.totalorder %s16, 2
      // Predicated region
      $region37: #{temporal_conv_net_forward.1} parent=5 // pred_check
        %p228 = pneg %p227
      $region38: #{temporal_conv_net_forward.1} parent=5 // pred_check_branch
        %230 = sbr.rel (%p228) target = $region40
      $region39: #{temporal_conv_net_forward.1} parent=5 // pred_region
        // Predicated region
        $region41: #{temporal_conv_net_forward.1} parent=39 // pred_check
          %p231 = pneg %p36
        $region42: #{temporal_conv_net_forward.1} parent=39 // pred_check_branch
          %233 = sbr.rel (%p231) target = $region44
        $region43: #{temporal_conv_net_forward.1} parent=39 // pred_region
          %p234 = scmp.lt.s32.totalorder %s16, 1
          %s235 = scalar_select %p234, %s16, 1
          %s236 = smul.addr %s235, 2
          %s237 = smul.addr %s236, 4
          %s238 = scalar_lea.vmem %s0, %s237
        $region44: #{temporal_conv_net_forward.1} parent=39 // pred_fallthru
          _
      $region40: #{temporal_conv_net_forward.1} parent=5 // pred_fallthru
        _
      %p239 = scmp.le.s32.totalorder 1, %s16
      %p240 = scmp.lt.s32.totalorder %s16, 3
      %p241 = pnand %p239, %p240
      %p242 = pneg %p241
      // Predicated region
      $region45: #{temporal_conv_net_forward.1} parent=5 // pred_check
        _
      $region46: #{temporal_conv_net_forward.1} parent=5 // pred_check_branch
        %244 = sbr.rel (%p241) target = $region48
      $region47: #{temporal_conv_net_forward.1} parent=5 // pred_region
        %s245 = ssub.s32 %s16, 1
        %p246 = scmp.lt.s32.totalorder %s21, 1
        %s247 = scalar_select %p246, %s21, 1
        %s248 = smul.addr %s247, 2
        %s249 = smul.addr %s248, 4
        %s250 = scalar_lea.vmem %s0, %s249
        %p251 = pneg %p42
        %p252 = pneg %p39
        %p253 = pneg %p63
        %p254 = pneg %p60
        %p255 = pneg %p84
        %p256 = pneg %p81
        %p257 = pneg %p105
        %p258 = pneg %p102
        %p259 = pneg %p126
        %p260 = pneg %p123
        %p261 = pneg %p147
        %p262 = pneg %p144
        %p263 = pneg %p168
        %p264 = pneg %p165
        %p265 = pneg %p194
        %p266 = pneg %p191
        %s267 = sand.u32 %s181, 1
        %s268 = scalar_lea.sflag [#allocation3], %s267
        %s269 = sand.u32 %s181, 1
        %s270 = scalar_lea.vmem [#allocation2], %s269
        %p271 = scmp.lt.s32.totalorder %s21, 1
        %s272 = scalar_select %p271, %s21, 1
        %s273 = smul.addr %s272, 2
        %s274 = smul.addr %s273, 4
        %s275 = scalar_lea.vmem %s0, %s274
        %v277 = vld [vmem:[%s275] sm:$0xf]
        %v278 = vld [vmem:[%s275 + $0x4] sm:$0xf]
        %v279 = vunpack.c.l.bf16 %v277
        %v280 = vunpack.c.l.bf16 %v278
        %vm283 = vcmask 1040384
        %v284 = vrot.slane %v279, 7
        %v285 = vrot.slane %v280, 7
        %v286 = vsel %vm283, %v284, %v285
        %v290 = vsel %vm283, 0.0, %v284
        %v291 = vsel %vm283, %v285, 0.0
        %v292 = vpack.c.bf16 %v286, %v290
        %v293 = vpack.c.bf16 %v291, %v291
        %v294 = vld [vmem:[%s1] sm:$0x3]
        %s295 = scalar_lea.vmem %s1, 2
        %v296 = vld [vmem:[%s295] sm:$0x3]
        %vm297 = vsmask.f32 7424
        %v299 = vshrl.u32 %v292, 16
        %v301 = vshll.u32 %v292, 16
        %v303 = vrot.slane %v301, 1
        %v304 = vor.u32 %v299, %v303
        %v306 = vshll.u32 %v293, 16
        %v308 = vrot.slane %v306, 1
        %v309 = vsel %vm297, %v304, %v308
        %v310 = vshrl.u32 %v293, 16
        %vm312 = vcmask 31744
        %v314 = vsel %vm312, %v309, 0
        %v317 = vsel %vm312, %v310, 0
        %vm319 = vcmask 1041408
        %v321 = vsel %vm319, %v296, 0
        %323 = vmatpush.bf16.msra.mxu0 0
        %324 = vmatpush.bf16.msra.mxu0 0
        %325 = vmatpush.bf16.msra.mxu0 0
        %326 = vmatpush.bf16.msra.mxu0 0
        %327 = vmatpush.bf16.msra.mxu0 0
        %328 = vmatpush.bf16.msra.mxu0 0
        %329 = vmatpush.bf16.msra.mxu0 0
        %330 = vmatpush.bf16.msra.mxu0 %v321
        %331 = vmatmul.bf16.gmra.mxu0 %v314
        %v332 = vpop.f32.mrf.mxu0
        %v333 = vadd.f32 0.0, %v332
        %v334 = vpop.f32.mrf.mxu0
        %v335 = vadd.f32 0.0, %v334
        %336 = vmatmul.bf16.gmra.mxu0 %v317
        %v337 = vpop.f32.mrf.mxu0
        %v338 = vadd.f32 0.0, %v337
        %v339 = vpop.f32.mrf.mxu0
        %340 = vdwg.mxu0
        %v341 = vsel %vm312, %v292, 0
        %v343 = vsel %vm312, %v293, 0
        %v346 = vsel %vm319, %v294, 0
        %348 = vmatpush.bf16.msra.mxu0 0
        %349 = vmatpush.bf16.msra.mxu0 0
        %350 = vmatpush.bf16.msra.mxu0 0
        %351 = vmatpush.bf16.msra.mxu0 0
        %352 = vmatpush.bf16.msra.mxu0 0
        %353 = vmatpush.bf16.msra.mxu0 0
        %354 = vmatpush.bf16.msra.mxu0 0
        %355 = vmatpush.bf16.msra.mxu0 %v346
        %356 = vmatmul.bf16.gmra.mxu0 %v341
        %v357 = vpop.f32.mrf.mxu0
        %v358 = vadd.f32 %v333, %v357
        %v359 = vpop.f32.mrf.mxu0
        %v360 = vadd.f32 %v335, %v359
        %361 = vmatmul.bf16.gmra.mxu0 %v343
        %v362 = vpop.f32.mrf.mxu0
        %v363 = vadd.f32 %v338, %v362
        %v364 = vpop.f32.mrf.mxu0
        %365 = vdwg.mxu0
        %v366 = vld [vmem:[%s2] sm:$0x1]
        %v368 = vperm.slane %v366, 0
        %v370 = vadd.f32 %v358, %v368
        %v371 = vadd.f32 %v360, %v368
        %v372 = vadd.f32 %v363, %v368
        %v373 = vmax.f32 %v370, 0.0
        %v374 = vmax.f32 %v371, 0.0
        %v375 = vmax.f32 %v372, 0.0
        %v379 = vrot.slane %v373, 6
        %v380 = vrot.slane %v374, 6
        %v381 = vsel %vm319, %v379, %v380
        %v382 = vrot.slane %v375, 6
        %v383 = vsel %vm319, %v380, %v382
        %v387 = vsel %vm319, 0.0, %v379
        %vm388 = vcmask 1042432
        %v389 = vsel %vm388, %v383, 0.0
        %v390 = vpack.c.bf16 %v381, %v387
        %v391 = vpack.c.bf16 %v389, %v389
        %v392 = vld [vmem:[%s3] sm:$0xf]
        %s393 = scalar_lea.vmem %s3, 4
        %v394 = vld [vmem:[%s393] sm:$0xf]
        %vm397 = vcmask 1046528
        %v398 = vrot.slane %v390, 1
        %v399 = vrot.slane %v391, 1
        %v400 = vsel %vm397, %v398, %v399
        %vm401 = vcmask 64512
        %v403 = vsel %vm401, %v400, 0
        %v406 = vsel %vm401, %v399, 0
        %vm408 = vcmask 1043456
        %v410 = vsel %vm408, %v394, 0
        %412 = vmatpush.bf16.msra.mxu0 0
        %413 = vmatpush.bf16.msra.mxu0 0
        %414 = vmatpush.bf16.msra.mxu0 0
        %415 = vmatpush.bf16.msra.mxu0 0
        %416 = vmatpush.bf16.msra.mxu0 0
        %417 = vmatpush.bf16.msra.mxu0 0
        %418 = vmatpush.bf16.msra.mxu0 0
        %419 = vmatpush.bf16.msra.mxu0 %v410
        %420 = vmatmul.bf16.gmra.mxu0 %v403
        %v421 = vpop.f32.mrf.mxu0
        %v422 = vadd.f32 0.0, %v421
        %v423 = vpop.f32.mrf.mxu0
        %v424 = vadd.f32 0.0, %v423
        %425 = vmatmul.bf16.gmra.mxu0 %v406
        %v426 = vpop.f32.mrf.mxu0
        %v427 = vadd.f32 0.0, %v426
        %v428 = vpop.f32.mrf.mxu0
        %429 = vdwg.mxu0
        %v431 = vsel %vm401, %v390, 0
        %v434 = vsel %vm401, %v391, 0
        %v437 = vsel %vm408, %v392, 0
        %439 = vmatpush.bf16.msra.mxu0 0
        %440 = vmatpush.bf16.msra.mxu0 0
        %441 = vmatpush.bf16.msra.mxu0 0
        %442 = vmatpush.bf16.msra.mxu0 0
        %443 = vmatpush.bf16.msra.mxu0 0
        %444 = vmatpush.bf16.msra.mxu0 0
        %445 = vmatpush.bf16.msra.mxu0 0
        %446 = vmatpush.bf16.msra.mxu0 %v437
        %447 = vmatmul.bf16.gmra.mxu0 %v431
        %v448 = vpop.f32.mrf.mxu0
        %v449 = vadd.f32 %v422, %v448
        %v450 = vpop.f32.mrf.mxu0
        %v451 = vadd.f32 %v424, %v450
        %452 = vmatmul.bf16.gmra.mxu0 %v434
        %v453 = vpop.f32.mrf.mxu0
        %v454 = vadd.f32 %v427, %v453
        %v455 = vpop.f32.mrf.mxu0
        %456 = vdwg.mxu0
        %v457 = vld [vmem:[%s4] sm:$0x1]
        %v459 = vperm.slane %v457, 0
        %v461 = vadd.f32 %v449, %v459
        %v462 = vadd.f32 %v451, %v459
        %v463 = vadd.f32 %v454, %v459
        %v464 = vmax.f32 %v461, 0.0
        %v465 = vmax.f32 %v462, 0.0
        %v466 = vmax.f32 %v463, 0.0
        %vm467 = vcmask 130048
        %v468 = vsel %vm467, %v464, 0.0
        %v469 = vsel %vm467, %v465, 0.0
        %v470 = vadd.f32 %v468, %v469
        %vm471 = vcmask 124928
        %v472 = vsel %vm471, %v466, 0.0
        %v473 = vadd.f32 %v470, %v472
        %v474 = vrot.slane %v473, 4
        %v475 = vadd.f32 %v473, %v474
        %v476 = vrot.slane %v475, 2
        %v477 = vadd.f32 %v475, %v476
        %v478 = vrot.slane %v477, 1
        %v479 = vadd.f32 %v477, %v478
        %v480 = vrcp.pop 19.0
        %v481 = vmul.f32 19.0, %v480
        %v482 = vsub.f32 1.0, %v481
        %v483 = vmul.f32 %v480, %v482
        %v484 = vadd.f32 %v480, %v483
        %vm485 = vweird.f32 %v480
        %v486 = vsel %vm485, %v480, %v484
        %v487 = vmul.f32 %v479, %v486
        %v488 = vpack.c.bf16 %v487, %v487
        %v489 = vld [vmem:[%s5] sm:$0xf]
        %v490 = vld [vmem:[%s5 + $0x4] sm:$0xf]
        %v491 = vld [vmem:[%s6] sm:$0x1]
        %v494 = vunpack.c.l.b16 %v489
        %v495 = vunpack.c.l.b16 %v490
        %v496 = vpack.c.b16 %v495, %v494
        %v499 = vsel %vm467, %v488, 0
        %501 = vmatpush.bf16.msra.mxu0 0
        %502 = vmatpush.bf16.msra.mxu0 0
        %503 = vmatpush.bf16.msra.mxu0 0
        %504 = vmatpush.bf16.msra.mxu0 0
        %505 = vmatpush.bf16.msra.mxu0 0
        %506 = vmatpush.bf16.msra.mxu0 0
        %507 = vmatpush.bf16.msra.mxu0 0
        %508 = vmatpush.bf16.msra.mxu0 %v496
        %509 = vmatmul.bf16.gmra.mxu0 %v499
        %v510 = vpop.f32.mrf.mxu0
        %v511 = vadd.f32 %v491, %v510
        %v512 = vpop.f32.mrf.mxu0
        %513 = vdwg.mxu0
        %vm514 = vcmask 8192
        %515 = vst.msk [vmem:[%s270] sm:$0x1] %vm514, %v511
        %s516 = sand.u32 %s181, 1
        %s517 = scalar_lea.sflag [#allocation3], %s516
        %s518 = sand.u32 %s181, 1
        %s519 = scalar_lea.vmem [#allocation2], %s518
        // Predicated region
        $region49: #{temporal_conv_net_forward.1} parent=47 // pred_check
          %p520 = pneg %p191
        $region50: #{temporal_conv_net_forward.1} parent=47 // pred_check_branch
          %522 = sbr.rel (%p520) target = $region52
        $region51: #{temporal_conv_net_forward.1} parent=47 // pred_region
          %524 = vsyncadd %s517, 0
          %s525 = scalar_lea.hbm %s7, %s21
          %s527 = sshll.u32 %s519, 4
          %s528 = int_to_ptr.vmem [resolvable:$true] %s527
          %s529 = sshll.u32 %s525, 4
          %s530 = int_to_ptr.hbm [resolvable:$true] %s529
          %532 = dma.vmem_to_hbm [thread:$0]  %s528, 16, %s530, %s517
        $region52: #{temporal_conv_net_forward.1} parent=47 // pred_fallthru
          _
      $region48: #{temporal_conv_net_forward.1} parent=5 // pred_fallthru
        _
      %p533 = scmp.le.s32.totalorder 2, %s16
      // Predicated region
      $region53: #{temporal_conv_net_forward.1} parent=5 // pred_check
        %p534 = pneg %p533
      $region54: #{temporal_conv_net_forward.1} parent=5 // pred_check_branch
        %536 = sbr.rel (%p534) target = $region56
      $region55: #{temporal_conv_net_forward.1} parent=5 // pred_region
        %s537 = ssub.s32 %s16, 2
        // Predicated region
        $region57: #{temporal_conv_net_forward.1} parent=55 // pred_check
          %p538 = pneg %p197
        $region58: #{temporal_conv_net_forward.1} parent=55 // pred_check_branch
          %540 = sbr.rel (%p538) target = $region60
        $region59: #{temporal_conv_net_forward.1} parent=55 // pred_region
          %s541 = sand.u32 %s182, 1
          %s542 = scalar_lea.sflag [#allocation3], %s541
          %s543 = sand.u32 %s182, 1
          %s544 = scalar_lea.vmem [#allocation2], %s543
          %546 = dma.done %s542, 16
        $region60: #{temporal_conv_net_forward.1} parent=55 // pred_fallthru
          _
      $region56: #{temporal_conv_net_forward.1} parent=5 // pred_fallthru
        _
    $region6: #{temporal_conv_net_forward.1} parent=1 // loop_footer
      %s20 = sadd.s32 1, %s16
    $region7: #{temporal_conv_net_forward.1} parent=1 // loop_footer_branch
      %15 = sbr.rel target = $region3
    $region8: #{temporal_conv_net_forward.1} parent=1 // loop_exit
      _
    %547 = vsyncpa [#allocation3], 1
    %s548 = scalar_lea.sflag [#allocation3], 1
    %549 = vsyncpa %s548, 1

</llo_original>
